<compile_context>
chip_gen: v7x
topology: tpu7x:2x2x1
jax: 0.10.0
libtpu: 0.0.40
codegen_flags: <defaults>
</compile_context>

<pallas_src>
import jax
import jax.numpy as jnp
from jax.experimental import pallas as pl
from jax.experimental.pallas import tpu as pltpu


def mlp_kernel(x_ref, w1_ref, b1_ref, w2_ref, b2_ref, w3_ref, b3_ref, o_ref):
    # Layer 1: (TB, 5) @ (5, 32) in fp32 (negligible MXU usage; full input precision).
    h1 = jnp.dot(x_ref[...], w1_ref[...], preferred_element_type=jnp.float32)
    h1 = jnp.maximum(h1 + b1_ref[...], 0.0)
    # Layer 2: (TB, 32) @ (32, 64); bf16 MXU operands, fp32 accumulation, fp32 bias + ReLU.
    h2 = jnp.dot(h1.astype(jnp.bfloat16), w2_ref[...], preferred_element_type=jnp.float32)
    h2 = jnp.maximum(h2 + b2_ref[...], 0.0)
    # Output layer: (TB, 64) @ (64, num_classes); stored unpadded in fp32.
    out = jnp.dot(h2.astype(jnp.bfloat16), w3_ref[...], preferred_element_type=jnp.float32)
    o_ref[...] = (out + b3_ref[...]).astype(o_ref.dtype)


def _round_up(n, m):
    return ((n + m - 1) // m) * m


def prepare_params(params):
    """One-time preprocessing (call at init, not per forward): bf16 weights for layers 2/3."""
    w1, b1, w2, b2, w3, b3 = params
    return (w1.astype(jnp.float32), b1.astype(jnp.float32),
            w2.astype(jnp.bfloat16), b2.astype(jnp.float32),
            w3.astype(jnp.bfloat16), b3.astype(jnp.float32))


def travel_recommender_forward(x, kernel_params, *, block_b=2048):
    """x: (B, 5) fp32; kernel_params from prepare_params(). Returns (B, num_classes) fp32."""
    w1, b1, w2b, b2, w3b, b3 = kernel_params
    B, feat = x.shape
    num_classes = w3b.shape[1]

    if B <= block_b:
        # Single grid step: block dims equal the full array dims, so any B is legal and
        # no batch padding / post-call slicing is needed. Best on single-TC v5e/v6e.
        tb, b_pad = B, B
    else:
        # Multi-step: block_b is a multiple of 8; pad B up minimally (sliced off at the end).
        tb = block_b
        b_pad = _round_up(B, tb)
    nb = pl.cdiv(b_pad, tb)

    xp = x if b_pad == B else jnp.pad(x, ((0, b_pad - B), (0, 0)))

    # Weights/biases: full-extent blocks mapped to block 0 every step -> VMEM-resident.
    def resident(a):
        return pl.BlockSpec(a.shape, lambda i: (0,) * a.ndim)

    out = pl.pallas_call(
        mlp_kernel,
        out_shape=jax.ShapeDtypeStruct((b_pad, num_classes), jnp.float32),
        grid=(nb,),
        in_specs=[pl.BlockSpec((tb, feat), lambda i: (i, 0)),
                  resident(w1), resident(b1),
                  resident(w2b), resident(b2),
                  resident(w3b), resident(b3)],
        out_specs=pl.BlockSpec((tb, num_classes), lambda i: (i, 0)),
        compiler_params=pltpu.CompilerParams(dimension_semantics=("parallel",)),
    )(xp, w1, b1, w2b, b2, w3b, b3)

    return out if b_pad == B else out[:B]


def init_params(key, num_classes):
    # Deterministic synthetic init matching nn.Linear shapes (stored transposed: (in, out)).
    k1, k2, k3, k4, k5, k6 = jax.random.split(key, 6)
    w1 = jax.random.normal(k1, (5, 32), jnp.float32) * 0.1
    b1 = jax.random.normal(k2, (1, 32), jnp.float32) * 0.1
    w2 = jax.random.normal(k3, (32, 64), jnp.float32) * 0.1
    b2 = jax.random.normal(k4, (1, 64), jnp.float32) * 0.1
    w3 = jax.random.normal(k5, (64, num_classes), jnp.float32) * 0.1
    b3 = jax.random.normal(k6, (1, num_classes), jnp.float32) * 0.1
    return (w1, b1, w2, b2, w3, b3)


def reference_forward_fp32(x, params):
    w1, b1, w2, b2, w3, b3 = params
    h = jnp.maximum(x @ w1 + b1, 0.0)
    h = jnp.maximum(h @ w2 + b2, 0.0)
    return h @ w3 + b3


def reference_forward_mixed(x, params):
    # Mirrors the kernel's precision: fp32 layer 1, bf16 operands / fp32 acc for layers 2-3.
    w1, b1, w2, b2, w3, b3 = params
    bf = jnp.bfloat16
    h = jnp.maximum(jnp.dot(x, w1, preferred_element_type=jnp.float32) + b1, 0.0)
    h = jnp.maximum(jnp.dot(h.astype(bf), w2.astype(bf),
                            preferred_element_type=jnp.float32) + b2, 0.0)
    return jnp.dot(h.astype(bf), w3.astype(bf), preferred_element_type=jnp.float32) + b3


if __name__ == "__main__":
    num_classes = 10
    batch = 256  # features=5 per the module; small batch -> single grid step

    key = jax.random.PRNGKey(0)
    kx, kp = jax.random.split(key)
    x = jax.random.normal(kx, (batch, 5), jnp.float32)
    params = init_params(kp, num_classes)
    kparams = prepare_params(params)  # one-time weight preprocessing (not per-call)

    out = travel_recommender_forward(x, kparams)
    out = jax.block_until_ready(out)
    assert out.shape == (batch, num_classes)

    # Tight check against a reference matching the kernel's mixed precision.
    ref_mixed = reference_forward_mixed(x, params)
    assert jnp.allclose(out, ref_mixed, atol=2e-3, rtol=2e-3)

    # Loose check against the original fp32 module semantics.
    ref_fp32 = reference_forward_fp32(x, params)
    assert jnp.allclose(out, ref_fp32, atol=2e-2, rtol=2e-2)

    print("KERNEL_OK")
</pallas_src>

<mosaic_0001>
module attributes {stable_mosaic.version = 11 : i64} {
  func.func @mlp_kernel(%arg0: i32, %arg1: memref<256x5xf32, #tpu.memory_space<vmem>>, %arg2: memref<5x32xf32, #tpu.memory_space<vmem>>, %arg3: memref<1x32xf32, #tpu.memory_space<vmem>>, %arg4: memref<32x64xbf16, #tpu.memory_space<vmem>>, %arg5: memref<1x64xf32, #tpu.memory_space<vmem>>, %arg6: memref<64x10xbf16, #tpu.memory_space<vmem>>, %arg7: memref<1x10xf32, #tpu.memory_space<vmem>>, %arg8: memref<256x10xf32, #tpu.memory_space<vmem>>) attributes {dimension_semantics = [#tpu.dimension_semantics<parallel>], iteration_bounds = array<i64: 1>, scalar_prefetch = 0 : i64, scratch_operands = 0 : i64, tpu.core_type = #tpu.core_type<tc>, window_params = [{transform_indices = @transform_0, window_bounds = array<i64: 256, 5>}, {pipeline_mode = #tpu.pipeline_mode<synchronous>, transform_indices = @transform_1, window_bounds = array<i64: 5, 32>}, {pipeline_mode = #tpu.pipeline_mode<synchronous>, transform_indices = @transform_2, window_bounds = array<i64: 1, 32>}, {pipeline_mode = #tpu.pipeline_mode<synchronous>, transform_indices = @transform_3, window_bounds = array<i64: 32, 64>}, {pipeline_mode = #tpu.pipeline_mode<synchronous>, transform_indices = @transform_4, window_bounds = array<i64: 1, 64>}, {pipeline_mode = #tpu.pipeline_mode<synchronous>, transform_indices = @transform_5, window_bounds = array<i64: 64, 10>}, {pipeline_mode = #tpu.pipeline_mode<synchronous>, transform_indices = @transform_6, window_bounds = array<i64: 1, 10>}, {transform_indices = @transform_7, window_bounds = array<i64: 256, 10>}]} {
    %c0 = arith.constant 0 : index
    %c0_0 = arith.constant 0 : index
    %0 = vector.load %arg1[%c0, %c0_0] : memref<256x5xf32, #tpu.memory_space<vmem>>, vector<256x5xf32>
    %c0_1 = arith.constant 0 : index
    %c0_2 = arith.constant 0 : index
    %1 = vector.load %arg2[%c0_1, %c0_2] : memref<5x32xf32, #tpu.memory_space<vmem>>, vector<5x32xf32>
    %cst = arith.constant dense<0.000000e+00> : vector<256x32xf32>
    %2 = tpu.matmul %0, %1, %cst {dimension_numbers = #tpu.dot_dimension_numbers<[1], [0], [0], [1], [0, 0, 1, 1], [], []>} : vector<256x5xf32>, vector<5x32xf32>, vector<256x32xf32> -> vector<256x32xf32>
    %c0_3 = arith.constant 0 : index
    %c0_4 = arith.constant 0 : index
    %3 = vector.load %arg3[%c0_3, %c0_4] : memref<1x32xf32, #tpu.memory_space<vmem>>, vector<1x32xf32>
    %4 = vector.broadcast %3 : vector<1x32xf32> to vector<256x32xf32>
    %5 = arith.addf %2, %4 : vector<256x32xf32>
    %cst_5 = arith.constant 0.000000e+00 : f32
    %6 = vector.broadcast %cst_5 : f32 to vector<256x32xf32>
    %7 = arith.maximumf %5, %6 : vector<256x32xf32>
    %8 = arith.truncf %7 : vector<256x32xf32> to vector<256x32xbf16>
    %c0_6 = arith.constant 0 : index
    %c0_7 = arith.constant 0 : index
    %9 = vector.load %arg4[%c0_6, %c0_7] : memref<32x64xbf16, #tpu.memory_space<vmem>>, vector<32x64xbf16>
    %cst_8 = arith.constant dense<0.000000e+00> : vector<256x64xf32>
    %10 = tpu.matmul %8, %9, %cst_8 {dimension_numbers = #tpu.dot_dimension_numbers<[1], [0], [0], [1], [0, 0, 1, 1], [], []>} : vector<256x32xbf16>, vector<32x64xbf16>, vector<256x64xf32> -> vector<256x64xf32>
    %c0_9 = arith.constant 0 : index
    %c0_10 = arith.constant 0 : index
    %11 = vector.load %arg5[%c0_9, %c0_10] : memref<1x64xf32, #tpu.memory_space<vmem>>, vector<1x64xf32>
    %12 = vector.broadcast %11 : vector<1x64xf32> to vector<256x64xf32>
    %13 = arith.addf %10, %12 : vector<256x64xf32>
    %cst_11 = arith.constant 0.000000e+00 : f32
    %14 = vector.broadcast %cst_11 : f32 to vector<256x64xf32>
    %15 = arith.maximumf %13, %14 : vector<256x64xf32>
    %16 = arith.truncf %15 : vector<256x64xf32> to vector<256x64xbf16>
    %c0_12 = arith.constant 0 : index
    %c0_13 = arith.constant 0 : index
    %17 = vector.load %arg6[%c0_12, %c0_13] : memref<64x10xbf16, #tpu.memory_space<vmem>>, vector<64x10xbf16>
    %cst_14 = arith.constant dense<0.000000e+00> : vector<256x10xf32>
    %18 = tpu.matmul %16, %17, %cst_14 {dimension_numbers = #tpu.dot_dimension_numbers<[1], [0], [0], [1], [0, 0, 1, 1], [], []>} : vector<256x64xbf16>, vector<64x10xbf16>, vector<256x10xf32> -> vector<256x10xf32>
    %c0_15 = arith.constant 0 : index
    %c0_16 = arith.constant 0 : index
    %19 = vector.load %arg7[%c0_15, %c0_16] : memref<1x10xf32, #tpu.memory_space<vmem>>, vector<1x10xf32>
    %20 = vector.broadcast %19 : vector<1x10xf32> to vector<256x10xf32>
    %21 = arith.addf %18, %20 : vector<256x10xf32>
    %c0_17 = arith.constant 0 : index
    %c0_18 = arith.constant 0 : index
    %22 = vector.load %arg8[%c0_17, %c0_18] : memref<256x10xf32, #tpu.memory_space<vmem>>, vector<256x10xf32>
    tpu.vector_store %arg8[%c0_17, %c0_18], %21 {strides = array<i32>} : memref<256x10xf32, #tpu.memory_space<vmem>>, vector<256x10xf32>,
    return
  }
  func.func @transform_0(%arg0: i32) -> (i32, i32) {
    %c0_i32 = arith.constant 0 : i32
    %c0_i32_0 = arith.constant 0 : i32
    return %arg0, %c0_i32 : i32, i32
  }
  func.func @transform_1(%arg0: i32) -> (i32, i32) {
    %c0_i32 = arith.constant 0 : i32
    %c0_i32_0 = arith.constant 0 : i32
    %c0_i32_1 = arith.constant 0 : i32
    return %c0_i32, %c0_i32_0 : i32, i32
  }
  func.func @transform_2(%arg0: i32) -> (i32, i32) {
    %c0_i32 = arith.constant 0 : i32
    %c0_i32_0 = arith.constant 0 : i32
    %c0_i32_1 = arith.constant 0 : i32
    return %c0_i32, %c0_i32_0 : i32, i32
  }
  func.func @transform_3(%arg0: i32) -> (i32, i32) {
    %c0_i32 = arith.constant 0 : i32
    %c0_i32_0 = arith.constant 0 : i32
    %c0_i32_1 = arith.constant 0 : i32
    return %c0_i32, %c0_i32_0 : i32, i32
  }
  func.func @transform_4(%arg0: i32) -> (i32, i32) {
    %c0_i32 = arith.constant 0 : i32
    %c0_i32_0 = arith.constant 0 : i32
    %c0_i32_1 = arith.constant 0 : i32
    return %c0_i32, %c0_i32_0 : i32, i32
  }
  func.func @transform_5(%arg0: i32) -> (i32, i32) {
    %c0_i32 = arith.constant 0 : i32
    %c0_i32_0 = arith.constant 0 : i32
    %c0_i32_1 = arith.constant 0 : i32
    return %c0_i32, %c0_i32_0 : i32, i32
  }
  func.func @transform_6(%arg0: i32) -> (i32, i32) {
    %c0_i32 = arith.constant 0 : i32
    %c0_i32_0 = arith.constant 0 : i32
    %c0_i32_1 = arith.constant 0 : i32
    return %c0_i32, %c0_i32_0 : i32, i32
  }
  func.func @transform_7(%arg0: i32) -> (i32, i32) {
    %c0_i32 = arith.constant 0 : i32
    %c0_i32_0 = arith.constant 0 : i32
    return %arg0, %c0_i32 : i32, i32
  }
}

</mosaic_0001>

<llo_original>
// kernel: tpu_custom_call.1
$region0: #{tpu_custom_call.1}
  #allocation0 [shape = 'u32[]', space=smem, size = 0x4, offset = 0x4, fixed_abs, tag = 'smem constant byte address 0x4 - core index']
  #allocation1 [shape = 'u32[144,128]{1,0:T(1,128)}', space=vmem, size = 0x12000, scoped, tag = 'internal scratch']
  %s0 = inlined_call_operand.vmem [shape: f32[256,5], index: 0, kind: input, shape index: {}]
  %s1 = inlined_call_operand.vmem [shape: f32[5,32], index: 1, kind: input, shape index: {}]
  %s2 = inlined_call_operand.vmem [shape: f32[1,32], index: 2, kind: input, shape index: {}]
  %s3 = inlined_call_operand.vmem [shape: bf16[32,64], index: 3, kind: input, shape index: {}]
  %s4 = inlined_call_operand.vmem [shape: f32[1,64], index: 4, kind: input, shape index: {}]
  %s5 = inlined_call_operand.vmem [shape: bf16[64,10], index: 5, kind: input, shape index: {}]
  %s6 = inlined_call_operand.vmem [shape: f32[1,10], index: 6, kind: input, shape index: {}]
  %s7 = inlined_call_operand.vmem [shape: f32[256,10], index: 7, kind: output, shape index: {}]
  %s8 = sld [smem:[#allocation0]]
  $region38: #{tpu_custom_call.1} parent=0
    _
  %s10 = ssub.s32 1, %s8
  %s11 = scalar_select 0, %s10, %s8
  // Predicated region
  $region2: #{tpu_custom_call.1} parent=0 // pred_check
    _
  $region3: #{tpu_custom_call.1} parent=0 // pred_check_branch
    %13 = sbr.rel (0) target = $region5
  $region4: #{tpu_custom_call.1} parent=0 // pred_region
    _
  $region5: #{tpu_custom_call.1} parent=0 // pred_fallthru
    _
  // Predicated region
  $region6: #{tpu_custom_call.1} parent=0 // pred_check
    _
  $region7: #{tpu_custom_call.1} parent=0 // pred_check_branch
    %15 = sbr.rel (0) target = $region9
  $region8: #{tpu_custom_call.1} parent=0 // pred_region
    _
  $region9: #{tpu_custom_call.1} parent=0 // pred_fallthru
    _
  // Predicated region
  $region10: #{tpu_custom_call.1} parent=0 // pred_check
    _
  $region11: #{tpu_custom_call.1} parent=0 // pred_check_branch
    %17 = sbr.rel (0) target = $region13
  $region12: #{tpu_custom_call.1} parent=0 // pred_region
    _
  $region13: #{tpu_custom_call.1} parent=0 // pred_fallthru
    _
  // Predicated region
  $region14: #{tpu_custom_call.1} parent=0 // pred_check
    _
  $region15: #{tpu_custom_call.1} parent=0 // pred_check_branch
    %19 = sbr.rel (0) target = $region17
  $region16: #{tpu_custom_call.1} parent=0 // pred_region
    _
  $region17: #{tpu_custom_call.1} parent=0 // pred_fallthru
    _
  // Predicated region
  $region18: #{tpu_custom_call.1} parent=0 // pred_check
    _
  $region19: #{tpu_custom_call.1} parent=0 // pred_check_branch
    %21 = sbr.rel (0) target = $region21
  $region20: #{tpu_custom_call.1} parent=0 // pred_region
    _
  $region21: #{tpu_custom_call.1} parent=0 // pred_fallthru
    _
  // Predicated region
  $region22: #{tpu_custom_call.1} parent=0 // pred_check
    _
  $region23: #{tpu_custom_call.1} parent=0 // pred_check_branch
    %23 = sbr.rel (0) target = $region25
  $region24: #{tpu_custom_call.1} parent=0 // pred_region
    _
  $region25: #{tpu_custom_call.1} parent=0 // pred_fallthru
    _
  // Predicated region
  $region26: #{tpu_custom_call.1} parent=0 // pred_check
    _
  $region27: #{tpu_custom_call.1} parent=0 // pred_check_branch
    %25 = sbr.rel (0) target = $region29
  $region28: #{tpu_custom_call.1} parent=0 // pred_region
    _
  $region29: #{tpu_custom_call.1} parent=0 // pred_fallthru
    _
  %v27 = vld [vmem:[%s0] sm:$0xff]
  %v28 = vld [vmem:[%s0 + $0x8] sm:$0xff]
  %v29 = vld [vmem:[%s0 + $0x10] sm:$0xff]
  %v30 = vld [vmem:[%s0 + $0x18] sm:$0xff]
  %v31 = vld [vmem:[%s0 + $0x20] sm:$0xff]
  %v32 = vld [vmem:[%s0 + $0x28] sm:$0xff]
  %v33 = vld [vmem:[%s0 + $0x30] sm:$0xff]
  %v34 = vld [vmem:[%s0 + $0x38] sm:$0xff]
  %v35 = vld [vmem:[%s0 + $0x40] sm:$0xff]
  %v36 = vld [vmem:[%s0 + $0x48] sm:$0xff]
  %v37 = vld [vmem:[%s0 + $0x50] sm:$0xff]
  %v38 = vld [vmem:[%s0 + $0x58] sm:$0xff]
  %v39 = vld [vmem:[%s0 + $0x60] sm:$0xff]
  %v40 = vld [vmem:[%s0 + $0x68] sm:$0xff]
  %v41 = vld [vmem:[%s0 + $0x70] sm:$0xff]
  %v42 = vld [vmem:[%s0 + $0x78] sm:$0xff]
  %v43 = vld [vmem:[%s0 + $0x80] sm:$0xff]
  %v44 = vld [vmem:[%s0 + $0x88] sm:$0xff]
  %v45 = vld [vmem:[%s0 + $0x90] sm:$0xff]
  %v46 = vld [vmem:[%s0 + $0x98] sm:$0xff]
  %v47 = vld [vmem:[%s0 + $0xa0] sm:$0xff]
  %v48 = vld [vmem:[%s0 + $0xa8] sm:$0xff]
  %v49 = vld [vmem:[%s0 + $0xb0] sm:$0xff]
  %v50 = vld [vmem:[%s0 + $0xb8] sm:$0xff]
  %v51 = vld [vmem:[%s0 + $0xc0] sm:$0xff]
  %v52 = vld [vmem:[%s0 + $0xc8] sm:$0xff]
  %v53 = vld [vmem:[%s0 + $0xd0] sm:$0xff]
  %v54 = vld [vmem:[%s0 + $0xd8] sm:$0xff]
  %v55 = vld [vmem:[%s0 + $0xe0] sm:$0xff]
  %v56 = vld [vmem:[%s0 + $0xe8] sm:$0xff]
  %v57 = vld [vmem:[%s0 + $0xf0] sm:$0xff]
  %v58 = vld [vmem:[%s0 + $0xf8] sm:$0xff]
  %v59 = vld [vmem:[%s1] sm:$0x1f]
  %v60 = vld [vmem:[%s2] sm:$0x1]
  %v62 = vlaneseq
  %v63 = vshrl.u32 %v62, 7
  %v64 = vsub.s32 0, %v63
  %v65 = vrot.slane %v60, %v64
  %vm67 = vcmask 39936
  %v69 = vsel %vm67, %v27, 0
  %v72 = vsel %vm67, %v28, 0
  %v75 = vsel %vm67, %v29, 0
  %v78 = vsel %vm67, %v30, 0
  %v81 = vsel %vm67, %v31, 0
  %v84 = vsel %vm67, %v32, 0
  %v87 = vsel %vm67, %v33, 0
  %v90 = vsel %vm67, %v34, 0
  %v93 = vsel %vm67, %v35, 0
  %v96 = vsel %vm67, %v36, 0
  %v99 = vsel %vm67, %v37, 0
  %v102 = vsel %vm67, %v38, 0
  %v105 = vsel %vm67, %v39, 0
  %v108 = vsel %vm67, %v40, 0
  %v111 = vsel %vm67, %v41, 0
  %v114 = vsel %vm67, %v42, 0
  %v117 = vsel %vm67, %v43, 0
  %v120 = vsel %vm67, %v44, 0
  %v123 = vsel %vm67, %v45, 0
  %v126 = vsel %vm67, %v46, 0
  %v129 = vsel %vm67, %v47, 0
  %v132 = vsel %vm67, %v48, 0
  %v135 = vsel %vm67, %v49, 0
  %v138 = vsel %vm67, %v50, 0
  %v141 = vsel %vm67, %v51, 0
  %v144 = vsel %vm67, %v52, 0
  %v147 = vsel %vm67, %v53, 0
  %v150 = vsel %vm67, %v54, 0
  %v153 = vsel %vm67, %v55, 0
  %v156 = vsel %vm67, %v56, 0
  %v159 = vsel %vm67, %v57, 0
  %v162 = vsel %vm67, %v58, 0
  %vm164 = vcmask 1044480
  %v166 = vsel %vm164, %v59, 0
  %168 = vmatprep.subr.mxu0 0.0
  %169 = vmatpush1.msra.mxu0 %v166
  %170 = vmatprep.subr.mxu0 0.0
  %171 = vmatpush1.msra.mxu0 0.0
  %172 = vmatprep.subr.mxu0 0.0
  %173 = vmatpush1.msra.mxu0 0.0
  %174 = vmatprep.subr.mxu0 0.0
  %175 = vmatpush1.msra.mxu0 0.0
  %176 = vmatprep.subr.mxu0 0.0
  %177 = vmatpush1.msra.mxu0 0.0
  %178 = vmatprep.subr.mxu0 0.0
  %179 = vmatpush1.msra.mxu0 0.0
  %180 = vmatprep.subr.mxu0 0.0
  %181 = vmatpush1.msra.mxu0 0.0
  %182 = vmatprep.subr.mxu0 0.0
  %183 = vmatpush1.msra.mxu0 0.0
  %184 = vmatprep.subr.mxu0 0.0
  %185 = vmatpush1.msra.mxu0 0.0
  %186 = vmatprep.subr.mxu0 0.0
  %187 = vmatpush1.msra.mxu0 0.0
  %188 = vmatprep.subr.mxu0 0.0
  %189 = vmatpush1.msra.mxu0 0.0
  %190 = vmatprep.subr.mxu0 0.0
  %191 = vmatpush1.msra.mxu0 0.0
  %192 = vmatprep.subr.mxu0 0.0
  %193 = vmatpush1.msra.mxu0 0.0
  %194 = vmatprep.subr.mxu0 0.0
  %195 = vmatpush1.msra.mxu0 0.0
  %196 = vmatprep.subr.mxu0 0.0
  %197 = vmatpush1.msra.mxu0 0.0
  %198 = vmatprep.subr.mxu0 0.0
  %199 = vmatpush1.msra.mxu0 0.0
  %200 = vmatprep.subr.mxu0 0.0
  %201 = vmatpush1.msra.mxu0 0.0
  %202 = vmatprep.subr.mxu0 0.0
  %203 = vmatpush1.msra.mxu0 0.0
  %204 = vmatprep.subr.mxu0 0.0
  %205 = vmatpush1.msra.mxu0 0.0
  %206 = vmatprep.subr.mxu0 0.0
  %207 = vmatpush1.msra.mxu0 0.0
  %208 = vmatprep.subr.mxu0 0.0
  %209 = vmatpush1.msra.mxu0 0.0
  %210 = vmatprep.subr.mxu0 0.0
  %211 = vmatpush1.msra.mxu0 0.0
  %212 = vmatprep.subr.mxu0 0.0
  %213 = vmatpush1.msra.mxu0 0.0
  %214 = vmatprep.subr.mxu0 0.0
  %215 = vmatpush1.msra.mxu0 0.0
  %216 = vmatprep.subr.mxu0 0.0
  %217 = vmatpush1.msra.mxu0 0.0
  %218 = vmatprep.subr.mxu0 0.0
  %219 = vmatpush1.msra.mxu0 0.0
  %220 = vmatprep.subr.mxu0 0.0
  %221 = vmatpush1.msra.mxu0 0.0
  %222 = vmatprep.subr.mxu0 0.0
  %223 = vmatpush1.msra.mxu0 0.0
  %224 = vmatprep.subr.mxu0 0.0
  %225 = vmatpush1.msra.mxu0 0.0
  %226 = vmatprep.subr.mxu0 0.0
  %227 = vmatpush1.msra.mxu0 0.0
  %228 = vmatprep.subr.mxu0 0.0
  %229 = vmatpush1.msra.mxu0 0.0
  %230 = vmatprep.subr.mxu0 0.0
  %231 = vmatpush1.msra.mxu0 0.0
  %232 = vmatprep.mubr.f32.mxu0 0.0
  %233 = vmatmul.mubr.f32.gmra.mrb[0].mxu0 %v69
  %v234 = vpop.f32.mrb[0].mxu0
  %v235 = vadd.f32 %v65, %v234
  %v236 = vpop.f32.mrb[0].mxu0
  %237 = vmatprep.mubr.f32.mxu0 0.0
  %238 = vmatmul.mubr.f32.gmra.mrb[0].mxu0 %v72
  %v239 = vpop.f32.mrb[0].mxu0
  %v240 = vadd.f32 %v65, %v239
  %v241 = vpop.f32.mrb[0].mxu0
  %242 = vmatprep.mubr.f32.mxu0 0.0
  %243 = vmatmul.mubr.f32.gmra.mrb[0].mxu0 %v75
  %v244 = vpop.f32.mrb[0].mxu0
  %v245 = vadd.f32 %v65, %v244
  %v246 = vpop.f32.mrb[0].mxu0
  %247 = vmatprep.mubr.f32.mxu0 0.0
  %248 = vmatmul.mubr.f32.gmra.mrb[0].mxu0 %v78
  %v249 = vpop.f32.mrb[0].mxu0
  %v250 = vadd.f32 %v65, %v249
  %v251 = vpop.f32.mrb[0].mxu0
  %252 = vmatprep.mubr.f32.mxu0 0.0
  %253 = vmatmul.mubr.f32.gmra.mrb[0].mxu0 %v81
  %v254 = vpop.f32.mrb[0].mxu0
  %v255 = vadd.f32 %v65, %v254
  %v256 = vpop.f32.mrb[0].mxu0
  %257 = vmatprep.mubr.f32.mxu0 0.0
  %258 = vmatmul.mubr.f32.gmra.mrb[0].mxu0 %v84
  %v259 = vpop.f32.mrb[0].mxu0
  %v260 = vadd.f32 %v65, %v259
  %v261 = vpop.f32.mrb[0].mxu0
  %262 = vmatprep.mubr.f32.mxu0 0.0
  %263 = vmatmul.mubr.f32.gmra.mrb[0].mxu0 %v87
  %v264 = vpop.f32.mrb[0].mxu0
  %v265 = vadd.f32 %v65, %v264
  %v266 = vpop.f32.mrb[0].mxu0
  %267 = vmatprep.mubr.f32.mxu0 0.0
  %268 = vmatmul.mubr.f32.gmra.mrb[0].mxu0 %v90
  %v269 = vpop.f32.mrb[0].mxu0
  %v270 = vadd.f32 %v65, %v269
  %v271 = vpop.f32.mrb[0].mxu0
  %272 = vmatprep.mubr.f32.mxu0 0.0
  %273 = vmatmul.mubr.f32.gmra.mrb[0].mxu0 %v93
  %v274 = vpop.f32.mrb[0].mxu0
  %v275 = vadd.f32 %v65, %v274
  %v276 = vpop.f32.mrb[0].mxu0
  %277 = vmatprep.mubr.f32.mxu0 0.0
  %278 = vmatmul.mubr.f32.gmra.mrb[0].mxu0 %v96
  %v279 = vpop.f32.mrb[0].mxu0
  %v280 = vadd.f32 %v65, %v279
  %v281 = vpop.f32.mrb[0].mxu0
  %282 = vmatprep.mubr.f32.mxu0 0.0
  %283 = vmatmul.mubr.f32.gmra.mrb[0].mxu0 %v99
  %v284 = vpop.f32.mrb[0].mxu0
  %v285 = vadd.f32 %v65, %v284
  %v286 = vpop.f32.mrb[0].mxu0
  %287 = vmatprep.mubr.f32.mxu0 0.0
  %288 = vmatmul.mubr.f32.gmra.mrb[0].mxu0 %v102
  %v289 = vpop.f32.mrb[0].mxu0
  %v290 = vadd.f32 %v65, %v289
  %v291 = vpop.f32.mrb[0].mxu0
  %292 = vmatprep.mubr.f32.mxu0 0.0
  %293 = vmatmul.mubr.f32.gmra.mrb[0].mxu0 %v105
  %v294 = vpop.f32.mrb[0].mxu0
  %v295 = vadd.f32 %v65, %v294
  %v296 = vpop.f32.mrb[0].mxu0
  %297 = vmatprep.mubr.f32.mxu0 0.0
  %298 = vmatmul.mubr.f32.gmra.mrb[0].mxu0 %v108
  %v299 = vpop.f32.mrb[0].mxu0
  %v300 = vadd.f32 %v65, %v299
  %v301 = vpop.f32.mrb[0].mxu0
  %302 = vmatprep.mubr.f32.mxu0 0.0
  %303 = vmatmul.mubr.f32.gmra.mrb[0].mxu0 %v111
  %v304 = vpop.f32.mrb[0].mxu0
  %v305 = vadd.f32 %v65, %v304
  %v306 = vpop.f32.mrb[0].mxu0
  %307 = vmatprep.mubr.f32.mxu0 0.0
  %308 = vmatmul.mubr.f32.gmra.mrb[0].mxu0 %v114
  %v309 = vpop.f32.mrb[0].mxu0
  %v310 = vadd.f32 %v65, %v309
  %v311 = vpop.f32.mrb[0].mxu0
  %312 = vmatprep.mubr.f32.mxu0 0.0
  %313 = vmatmul.mubr.f32.gmra.mrb[0].mxu0 %v117
  %v314 = vpop.f32.mrb[0].mxu0
  %v315 = vadd.f32 %v65, %v314
  %v316 = vpop.f32.mrb[0].mxu0
  %317 = vmatprep.mubr.f32.mxu0 0.0
  %318 = vmatmul.mubr.f32.gmra.mrb[0].mxu0 %v120
  %v319 = vpop.f32.mrb[0].mxu0
  %v320 = vadd.f32 %v65, %v319
  %v321 = vpop.f32.mrb[0].mxu0
  %322 = vmatprep.mubr.f32.mxu0 0.0
  %323 = vmatmul.mubr.f32.gmra.mrb[0].mxu0 %v123
  %v324 = vpop.f32.mrb[0].mxu0
  %v325 = vadd.f32 %v65, %v324
  %v326 = vpop.f32.mrb[0].mxu0
  %327 = vmatprep.mubr.f32.mxu0 0.0
  %328 = vmatmul.mubr.f32.gmra.mrb[0].mxu0 %v126
  %v329 = vpop.f32.mrb[0].mxu0
  %v330 = vadd.f32 %v65, %v329
  %v331 = vpop.f32.mrb[0].mxu0
  %332 = vmatprep.mubr.f32.mxu0 0.0
  %333 = vmatmul.mubr.f32.gmra.mrb[0].mxu0 %v129
  %v334 = vpop.f32.mrb[0].mxu0
  %v335 = vadd.f32 %v65, %v334
  %v336 = vpop.f32.mrb[0].mxu0
  %337 = vmatprep.mubr.f32.mxu0 0.0
  %338 = vmatmul.mubr.f32.gmra.mrb[0].mxu0 %v132
  %v339 = vpop.f32.mrb[0].mxu0
  %v340 = vadd.f32 %v65, %v339
  %v341 = vpop.f32.mrb[0].mxu0
  %342 = vmatprep.mubr.f32.mxu0 0.0
  %343 = vmatmul.mubr.f32.gmra.mrb[0].mxu0 %v135
  %v344 = vpop.f32.mrb[0].mxu0
  %v345 = vadd.f32 %v65, %v344
  %v346 = vpop.f32.mrb[0].mxu0
  %347 = vmatprep.mubr.f32.mxu0 0.0
  %348 = vmatmul.mubr.f32.gmra.mrb[0].mxu0 %v138
  %v349 = vpop.f32.mrb[0].mxu0
  %v350 = vadd.f32 %v65, %v349
  %v351 = vpop.f32.mrb[0].mxu0
  %352 = vmatprep.mubr.f32.mxu0 0.0
  %353 = vmatmul.mubr.f32.gmra.mrb[0].mxu0 %v141
  %v354 = vpop.f32.mrb[0].mxu0
  %v355 = vadd.f32 %v65, %v354
  %v356 = vpop.f32.mrb[0].mxu0
  %357 = vmatprep.mubr.f32.mxu0 0.0
  %358 = vmatmul.mubr.f32.gmra.mrb[0].mxu0 %v144
  %v359 = vpop.f32.mrb[0].mxu0
  %v360 = vadd.f32 %v65, %v359
  %v361 = vpop.f32.mrb[0].mxu0
  %362 = vmatprep.mubr.f32.mxu0 0.0
  %363 = vmatmul.mubr.f32.gmra.mrb[0].mxu0 %v147
  %v364 = vpop.f32.mrb[0].mxu0
  %v365 = vadd.f32 %v65, %v364
  %v366 = vpop.f32.mrb[0].mxu0
  %367 = vmatprep.mubr.f32.mxu0 0.0
  %368 = vmatmul.mubr.f32.gmra.mrb[0].mxu0 %v150
  %v369 = vpop.f32.mrb[0].mxu0
  %v370 = vadd.f32 %v65, %v369
  %v371 = vpop.f32.mrb[0].mxu0
  %372 = vmatprep.mubr.f32.mxu0 0.0
  %373 = vmatmul.mubr.f32.gmra.mrb[0].mxu0 %v153
  %v374 = vpop.f32.mrb[0].mxu0
  %v375 = vadd.f32 %v65, %v374
  %v376 = vpop.f32.mrb[0].mxu0
  %377 = vmatprep.mubr.f32.mxu0 0.0
  %378 = vmatmul.mubr.f32.gmra.mrb[0].mxu0 %v156
  %v379 = vpop.f32.mrb[0].mxu0
  %v380 = vadd.f32 %v65, %v379
  %v381 = vpop.f32.mrb[0].mxu0
  %382 = vmatprep.mubr.f32.mxu0 0.0
  %383 = vmatmul.mubr.f32.gmra.mrb[0].mxu0 %v159
  %v384 = vpop.f32.mrb[0].mxu0
  %v385 = vadd.f32 %v65, %v384
  %v386 = vpop.f32.mrb[0].mxu0
  %387 = vmatprep.mubr.f32.mxu0 0.0
  %388 = vmatmul.mubr.f32.gmra.mrb[0].mxu0 %v162
  %v389 = vpop.f32.mrb[0].mxu0
  %v390 = vadd.f32 %v65, %v389
  %v391 = vpop.f32.mrb[0].mxu0
  %392 = vdwg.mxu0
  %v393 = vmax.f32 %v235, 0.0
  %v394 = vmax.f32 %v240, 0.0
  %v395 = vmax.f32 %v245, 0.0
  %v396 = vmax.f32 %v250, 0.0
  %v397 = vmax.f32 %v255, 0.0
  %v398 = vmax.f32 %v260, 0.0
  %v399 = vmax.f32 %v265, 0.0
  %v400 = vmax.f32 %v270, 0.0
  %v401 = vmax.f32 %v275, 0.0
  %v402 = vmax.f32 %v280, 0.0
  %v403 = vmax.f32 %v285, 0.0
  %v404 = vmax.f32 %v290, 0.0
  %v405 = vmax.f32 %v295, 0.0
  %v406 = vmax.f32 %v300, 0.0
  %v407 = vmax.f32 %v305, 0.0
  %v408 = vmax.f32 %v310, 0.0
  %v409 = vmax.f32 %v315, 0.0
  %v410 = vmax.f32 %v320, 0.0
  %v411 = vmax.f32 %v325, 0.0
  %v412 = vmax.f32 %v330, 0.0
  %v413 = vmax.f32 %v335, 0.0
  %v414 = vmax.f32 %v340, 0.0
  %v415 = vmax.f32 %v345, 0.0
  %v416 = vmax.f32 %v350, 0.0
  %v417 = vmax.f32 %v355, 0.0
  %v418 = vmax.f32 %v360, 0.0
  %v419 = vmax.f32 %v365, 0.0
  %v420 = vmax.f32 %v370, 0.0
  %v421 = vmax.f32 %v375, 0.0
  %v422 = vmax.f32 %v380, 0.0
  %v423 = vmax.f32 %v385, 0.0
  %v424 = vmax.f32 %v390, 0.0
  %v425 = vpack.c.bf16 %v394, %v393
  %v426 = vpack.c.bf16 %v396, %v395
  %v427 = vpack.c.bf16 %v398, %v397
  %v428 = vpack.c.bf16 %v400, %v399
  %v429 = vpack.c.bf16 %v402, %v401
  %v430 = vpack.c.bf16 %v404, %v403
  %v431 = vpack.c.bf16 %v406, %v405
  %v432 = vpack.c.bf16 %v408, %v407
  %v433 = vpack.c.bf16 %v410, %v409
  %v434 = vpack.c.bf16 %v412, %v411
  %v435 = vpack.c.bf16 %v414, %v413
  %v436 = vpack.c.bf16 %v416, %v415
  %v437 = vpack.c.bf16 %v418, %v417
  %v438 = vpack.c.bf16 %v420, %v419
  %v439 = vpack.c.bf16 %v422, %v421
  %v440 = vpack.c.bf16 %v424, %v423
  %v441 = vld [vmem:[%s3] sm:$0xf]
  %v442 = vld [vmem:[%s3 + $0x4] sm:$0xf]
  %v443 = vld [vmem:[%s3 + $0x8] sm:$0xf]
  %v444 = vld [vmem:[%s3 + $0xc] sm:$0xf]
  %v445 = vld [vmem:[%s4] sm:$0x1]
  %v447 = vlaneseq
  %v448 = vshrl.u32 %v447, 7
  %v449 = vsub.s32 0, %v448
  %v450 = vrot.slane %v445, %v449
  %v456 = vunpack.c.l.b16 %v441
  %v457 = vunpack.c.l.b16 %v442
  %v458 = vunpack.c.l.b16 %v443
  %v459 = vunpack.c.l.b16 %v444
  %v460 = vpack.c.b16 %v457, %v456
  %v461 = vpack.c.b16 %v459, %v458
  %vm464 = vcmask 261120
  %v466 = vsel %vm464, %v425, 0
  %v469 = vsel %vm464, %v426, 0
  %v472 = vsel %vm464, %v427, 0
  %v475 = vsel %vm464, %v428, 0
  %v478 = vsel %vm464, %v429, 0
  %v481 = vsel %vm464, %v430, 0
  %v484 = vsel %vm464, %v431, 0
  %v487 = vsel %vm464, %v432, 0
  %v490 = vsel %vm464, %v433, 0
  %v493 = vsel %vm464, %v434, 0
  %v496 = vsel %vm464, %v435, 0
  %v499 = vsel %vm464, %v436, 0
  %v502 = vsel %vm464, %v437, 0
  %v505 = vsel %vm464, %v438, 0
  %v508 = vsel %vm464, %v439, 0
  %v511 = vsel %vm464, %v440, 0
  %513 = vmatprep.subr.bf16.mxu0 0
  %514 = vmatpush1.bf16.msra.mxu0 %v460
  %515 = vmatprep.subr.bf16.mxu0 0
  %516 = vmatpush1.bf16.msra.mxu0 %v461
  %517 = vmatprep.subr.bf16.mxu0 0
  %518 = vmatpush1.bf16.msra.mxu0 0
  %519 = vmatprep.subr.bf16.mxu0 0
  %520 = vmatpush1.bf16.msra.mxu0 0
  %521 = vmatprep.subr.bf16.mxu0 0
  %522 = vmatpush1.bf16.msra.mxu0 0
  %523 = vmatprep.subr.bf16.mxu0 0
  %524 = vmatpush1.bf16.msra.mxu0 0
  %525 = vmatprep.subr.bf16.mxu0 0
  %526 = vmatpush1.bf16.msra.mxu0 0
  %527 = vmatprep.subr.bf16.mxu0 0
  %528 = vmatpush1.bf16.msra.mxu0 0
  %529 = vmatprep.subr.bf16.mxu0 0
  %530 = vmatpush1.bf16.msra.mxu0 0
  %531 = vmatprep.subr.bf16.mxu0 0
  %532 = vmatpush1.bf16.msra.mxu0 0
  %533 = vmatprep.subr.bf16.mxu0 0
  %534 = vmatpush1.bf16.msra.mxu0 0
  %535 = vmatprep.subr.bf16.mxu0 0
  %536 = vmatpush1.bf16.msra.mxu0 0
  %537 = vmatprep.subr.bf16.mxu0 0
  %538 = vmatpush1.bf16.msra.mxu0 0
  %539 = vmatprep.subr.bf16.mxu0 0
  %540 = vmatpush1.bf16.msra.mxu0 0
  %541 = vmatprep.subr.bf16.mxu0 0
  %542 = vmatpush1.bf16.msra.mxu0 0
  %543 = vmatprep.subr.bf16.mxu0 0
  %544 = vmatpush1.bf16.msra.mxu0 0
  %545 = vmatprep.mubr.bf16.mxu0 0
  %546 = vmatmul.mubr.bf16.gmra.mrb[0].mxu0 %v466
  %v547 = vpop.f32.mrb[0].mxu0
  %v548 = vadd.f32 %v450, %v547
  %v549 = vpop.f32.mrb[0].mxu0
  %v550 = vpop.f32.mrb[0].mxu0
  %v551 = vadd.f32 %v450, %v550
  %v552 = vpop.f32.mrb[0].mxu0
  %553 = vmatprep.mubr.bf16.mxu0 0
  %554 = vmatmul.mubr.bf16.gmra.mrb[0].mxu0 %v469
  %v555 = vpop.f32.mrb[0].mxu0
  %v556 = vadd.f32 %v450, %v555
  %v557 = vpop.f32.mrb[0].mxu0
  %v558 = vpop.f32.mrb[0].mxu0
  %v559 = vadd.f32 %v450, %v558
  %v560 = vpop.f32.mrb[0].mxu0
  %561 = vmatprep.mubr.bf16.mxu0 0
  %562 = vmatmul.mubr.bf16.gmra.mrb[0].mxu0 %v472
  %v563 = vpop.f32.mrb[0].mxu0
  %v564 = vadd.f32 %v450, %v563
  %v565 = vpop.f32.mrb[0].mxu0
  %v566 = vpop.f32.mrb[0].mxu0
  %v567 = vadd.f32 %v450, %v566
  %v568 = vpop.f32.mrb[0].mxu0
  %569 = vmatprep.mubr.bf16.mxu0 0
  %570 = vmatmul.mubr.bf16.gmra.mrb[0].mxu0 %v475
  %v571 = vpop.f32.mrb[0].mxu0
  %v572 = vadd.f32 %v450, %v571
  %v573 = vpop.f32.mrb[0].mxu0
  %v574 = vpop.f32.mrb[0].mxu0
  %v575 = vadd.f32 %v450, %v574
  %v576 = vpop.f32.mrb[0].mxu0
  %577 = vmatprep.mubr.bf16.mxu0 0
  %578 = vmatmul.mubr.bf16.gmra.mrb[0].mxu0 %v478
  %v579 = vpop.f32.mrb[0].mxu0
  %v580 = vadd.f32 %v450, %v579
  %v581 = vpop.f32.mrb[0].mxu0
  %v582 = vpop.f32.mrb[0].mxu0
  %v583 = vadd.f32 %v450, %v582
  %v584 = vpop.f32.mrb[0].mxu0
  %585 = vmatprep.mubr.bf16.mxu0 0
  %586 = vmatmul.mubr.bf16.gmra.mrb[0].mxu0 %v481
  %v587 = vpop.f32.mrb[0].mxu0
  %v588 = vadd.f32 %v450, %v587
  %v589 = vpop.f32.mrb[0].mxu0
  %v590 = vpop.f32.mrb[0].mxu0
  %v591 = vadd.f32 %v450, %v590
  %v592 = vpop.f32.mrb[0].mxu0
  %593 = vmatprep.mubr.bf16.mxu0 0
  %594 = vmatmul.mubr.bf16.gmra.mrb[0].mxu0 %v484
  %v595 = vpop.f32.mrb[0].mxu0
  %v596 = vadd.f32 %v450, %v595
  %v597 = vpop.f32.mrb[0].mxu0
  %v598 = vpop.f32.mrb[0].mxu0
  %v599 = vadd.f32 %v450, %v598
  %v600 = vpop.f32.mrb[0].mxu0
  %601 = vmatprep.mubr.bf16.mxu0 0
  %602 = vmatmul.mubr.bf16.gmra.mrb[0].mxu0 %v487
  %v603 = vpop.f32.mrb[0].mxu0
  %v604 = vadd.f32 %v450, %v603
  %v605 = vpop.f32.mrb[0].mxu0
  %v606 = vpop.f32.mrb[0].mxu0
  %v607 = vadd.f32 %v450, %v606
  %v608 = vpop.f32.mrb[0].mxu0
  %609 = vmatprep.mubr.bf16.mxu0 0
  %610 = vmatmul.mubr.bf16.gmra.mrb[0].mxu0 %v490
  %v611 = vpop.f32.mrb[0].mxu0
  %v612 = vadd.f32 %v450, %v611
  %v613 = vpop.f32.mrb[0].mxu0
  %v614 = vpop.f32.mrb[0].mxu0
  %v615 = vadd.f32 %v450, %v614
  %v616 = vpop.f32.mrb[0].mxu0
  %617 = vmatprep.mubr.bf16.mxu0 0
  %618 = vmatmul.mubr.bf16.gmra.mrb[0].mxu0 %v493
  %v619 = vpop.f32.mrb[0].mxu0
  %v620 = vadd.f32 %v450, %v619
  %v621 = vpop.f32.mrb[0].mxu0
  %v622 = vpop.f32.mrb[0].mxu0
  %v623 = vadd.f32 %v450, %v622
  %v624 = vpop.f32.mrb[0].mxu0
  %625 = vmatprep.mubr.bf16.mxu0 0
  %626 = vmatmul.mubr.bf16.gmra.mrb[0].mxu0 %v496
  %v627 = vpop.f32.mrb[0].mxu0
  %v628 = vadd.f32 %v450, %v627
  %v629 = vpop.f32.mrb[0].mxu0
  %v630 = vpop.f32.mrb[0].mxu0
  %v631 = vadd.f32 %v450, %v630
  %v632 = vpop.f32.mrb[0].mxu0
  %633 = vmatprep.mubr.bf16.mxu0 0
  %634 = vmatmul.mubr.bf16.gmra.mrb[0].mxu0 %v499
  %v635 = vpop.f32.mrb[0].mxu0
  %v636 = vadd.f32 %v450, %v635
  %v637 = vpop.f32.mrb[0].mxu0
  %v638 = vpop.f32.mrb[0].mxu0
  %v639 = vadd.f32 %v450, %v638
  %v640 = vpop.f32.mrb[0].mxu0
  %641 = vmatprep.mubr.bf16.mxu0 0
  %642 = vmatmul.mubr.bf16.gmra.mrb[0].mxu0 %v502
  %v643 = vpop.f32.mrb[0].mxu0
  %v644 = vadd.f32 %v450, %v643
  %v645 = vpop.f32.mrb[0].mxu0
  %v646 = vpop.f32.mrb[0].mxu0
  %v647 = vadd.f32 %v450, %v646
  %v648 = vpop.f32.mrb[0].mxu0
  %649 = vmatprep.mubr.bf16.mxu0 0
  %650 = vmatmul.mubr.bf16.gmra.mrb[0].mxu0 %v505
  %v651 = vpop.f32.mrb[0].mxu0
  %v652 = vadd.f32 %v450, %v651
  %v653 = vpop.f32.mrb[0].mxu0
  %v654 = vpop.f32.mrb[0].mxu0
  %v655 = vadd.f32 %v450, %v654
  %v656 = vpop.f32.mrb[0].mxu0
  %657 = vmatprep.mubr.bf16.mxu0 0
  %658 = vmatmul.mubr.bf16.gmra.mrb[0].mxu0 %v508
  %v659 = vpop.f32.mrb[0].mxu0
  %v660 = vadd.f32 %v450, %v659
  %v661 = vpop.f32.mrb[0].mxu0
  %v662 = vpop.f32.mrb[0].mxu0
  %v663 = vadd.f32 %v450, %v662
  %v664 = vpop.f32.mrb[0].mxu0
  %665 = vmatprep.mubr.bf16.mxu0 0
  %666 = vmatmul.mubr.bf16.gmra.mrb[0].mxu0 %v511
  %v667 = vpop.f32.mrb[0].mxu0
  %v668 = vadd.f32 %v450, %v667
  %v669 = vpop.f32.mrb[0].mxu0
  %v670 = vpop.f32.mrb[0].mxu0
  %v671 = vadd.f32 %v450, %v670
  %v672 = vpop.f32.mrb[0].mxu0
  %673 = vdwg.mxu0
  %v674 = vmax.f32 %v548, 0.0
  %v675 = vmax.f32 %v551, 0.0
  %v676 = vmax.f32 %v556, 0.0
  %v677 = vmax.f32 %v559, 0.0
  %v678 = vmax.f32 %v564, 0.0
  %v679 = vmax.f32 %v567, 0.0
  %v680 = vmax.f32 %v572, 0.0
  %v681 = vmax.f32 %v575, 0.0
  %v682 = vmax.f32 %v580, 0.0
  %v683 = vmax.f32 %v583, 0.0
  %v684 = vmax.f32 %v588, 0.0
  %v685 = vmax.f32 %v591, 0.0
  %v686 = vmax.f32 %v596, 0.0
  %v687 = vmax.f32 %v599, 0.0
  %v688 = vmax.f32 %v604, 0.0
  %v689 = vmax.f32 %v607, 0.0
  %v690 = vmax.f32 %v612, 0.0
  %v691 = vmax.f32 %v615, 0.0
  %v692 = vmax.f32 %v620, 0.0
  %v693 = vmax.f32 %v623, 0.0
  %v694 = vmax.f32 %v628, 0.0
  %v695 = vmax.f32 %v631, 0.0
  %v696 = vmax.f32 %v636, 0.0
  %v697 = vmax.f32 %v639, 0.0
  %v698 = vmax.f32 %v644, 0.0
  %v699 = vmax.f32 %v647, 0.0
  %v700 = vmax.f32 %v652, 0.0
  %v701 = vmax.f32 %v655, 0.0
  %v702 = vmax.f32 %v660, 0.0
  %v703 = vmax.f32 %v663, 0.0
  %v704 = vmax.f32 %v668, 0.0
  %v705 = vmax.f32 %v671, 0.0
  %v706 = vpack.c.bf16 %v675, %v674
  %v707 = vpack.c.bf16 %v677, %v676
  %v708 = vpack.c.bf16 %v679, %v678
  %v709 = vpack.c.bf16 %v681, %v680
  %v710 = vpack.c.bf16 %v683, %v682
  %v711 = vpack.c.bf16 %v685, %v684
  %v712 = vpack.c.bf16 %v687, %v686
  %v713 = vpack.c.bf16 %v689, %v688
  %v714 = vpack.c.bf16 %v691, %v690
  %v715 = vpack.c.bf16 %v693, %v692
  %v716 = vpack.c.bf16 %v695, %v694
  %v717 = vpack.c.bf16 %v697, %v696
  %v718 = vpack.c.bf16 %v699, %v698
  %v719 = vpack.c.bf16 %v701, %v700
  %v720 = vpack.c.bf16 %v703, %v702
  %v721 = vpack.c.bf16 %v705, %v704
  %v722 = vld [vmem:[%s5] sm:$0xf]
  %v723 = vld [vmem:[%s5 + $0x4] sm:$0xf]
  %v724 = vld [vmem:[%s5 + $0x8] sm:$0xf]
  %v725 = vld [vmem:[%s5 + $0xc] sm:$0xf]
  %v726 = vld [vmem:[%s5 + $0x10] sm:$0xf]
  %v727 = vld [vmem:[%s5 + $0x14] sm:$0xf]
  %v728 = vld [vmem:[%s5 + $0x18] sm:$0xf]
  %v729 = vld [vmem:[%s5 + $0x1c] sm:$0xf]
  %v730 = vld [vmem:[%s6] sm:$0x1]
  %v732 = vlaneseq
  %v733 = vshrl.u32 %v732, 7
  %v734 = vsub.s32 0, %v733
  %v735 = vrot.slane %v730, %v734
  %v745 = vunpack.c.l.b16 %v722
  %v746 = vunpack.c.l.b16 %v723
  %v747 = vunpack.c.l.b16 %v724
  %v748 = vunpack.c.l.b16 %v725
  %v749 = vunpack.c.l.b16 %v726
  %v750 = vunpack.c.l.b16 %v727
  %v751 = vunpack.c.l.b16 %v728
  %v752 = vunpack.c.l.b16 %v729
  %v753 = vpack.c.b16 %v746, %v745
  %v754 = vpack.c.b16 %v748, %v747
  %v755 = vpack.c.b16 %v750, %v749
  %v756 = vpack.c.b16 %v752, %v751
  %vm761 = vcmask 523264
  %v763 = vsel %vm761, %v706, 0
  %v766 = vsel %vm761, %v707, 0
  %v769 = vsel %vm761, %v708, 0
  %v772 = vsel %vm761, %v709, 0
  %v775 = vsel %vm761, %v710, 0
  %v778 = vsel %vm761, %v711, 0
  %v781 = vsel %vm761, %v712, 0
  %v784 = vsel %vm761, %v713, 0
  %v787 = vsel %vm761, %v714, 0
  %v790 = vsel %vm761, %v715, 0
  %v793 = vsel %vm761, %v716, 0
  %v796 = vsel %vm761, %v717, 0
  %v799 = vsel %vm761, %v718, 0
  %v802 = vsel %vm761, %v719, 0
  %v805 = vsel %vm761, %v720, 0
  %v808 = vsel %vm761, %v721, 0
  %810 = vmatprep.subr.bf16.mxu0 0
  %811 = vmatpush1.bf16.msra.mxu0 %v753
  %812 = vmatprep.subr.bf16.mxu0 0
  %813 = vmatpush1.bf16.msra.mxu0 %v754
  %814 = vmatprep.subr.bf16.mxu0 0
  %815 = vmatpush1.bf16.msra.mxu0 %v755
  %816 = vmatprep.subr.bf16.mxu0 0
  %817 = vmatpush1.bf16.msra.mxu0 %v756
  %818 = vmatprep.subr.bf16.mxu0 0
  %819 = vmatpush1.bf16.msra.mxu0 0
  %820 = vmatprep.subr.bf16.mxu0 0
  %821 = vmatpush1.bf16.msra.mxu0 0
  %822 = vmatprep.subr.bf16.mxu0 0
  %823 = vmatpush1.bf16.msra.mxu0 0
  %824 = vmatprep.subr.bf16.mxu0 0
  %825 = vmatpush1.bf16.msra.mxu0 0
  %826 = vmatprep.subr.bf16.mxu0 0
  %827 = vmatpush1.bf16.msra.mxu0 0
  %828 = vmatprep.subr.bf16.mxu0 0
  %829 = vmatpush1.bf16.msra.mxu0 0
  %830 = vmatprep.subr.bf16.mxu0 0
  %831 = vmatpush1.bf16.msra.mxu0 0
  %832 = vmatprep.subr.bf16.mxu0 0
  %833 = vmatpush1.bf16.msra.mxu0 0
  %834 = vmatprep.subr.bf16.mxu0 0
  %835 = vmatpush1.bf16.msra.mxu0 0
  %836 = vmatprep.subr.bf16.mxu0 0
  %837 = vmatpush1.bf16.msra.mxu0 0
  %838 = vmatprep.subr.bf16.mxu0 0
  %839 = vmatpush1.bf16.msra.mxu0 0
  %840 = vmatprep.subr.bf16.mxu0 0
  %841 = vmatpush1.bf16.msra.mxu0 0
  %842 = vmatprep.mubr.bf16.mxu0 0
  %843 = vmatmul.mubr.bf16.gmra.mrb[0].mxu0 %v763
  %v844 = vpop.f32.mrb[0].mxu0
  %v845 = vadd.f32 %v735, %v844
  %v846 = vpop.f32.mrb[0].mxu0
  %v847 = vpop.f32.mrb[0].mxu0
  %v848 = vadd.f32 %v735, %v847
  %v849 = vpop.f32.mrb[0].mxu0
  %850 = vmatprep.mubr.bf16.mxu0 0
  %851 = vmatmul.mubr.bf16.gmra.mrb[0].mxu0 %v766
  %v852 = vpop.f32.mrb[0].mxu0
  %v853 = vadd.f32 %v735, %v852
  %v854 = vpop.f32.mrb[0].mxu0
  %v855 = vpop.f32.mrb[0].mxu0
  %v856 = vadd.f32 %v735, %v855
  %v857 = vpop.f32.mrb[0].mxu0
  %858 = vmatprep.mubr.bf16.mxu0 0
  %859 = vmatmul.mubr.bf16.gmra.mrb[0].mxu0 %v769
  %v860 = vpop.f32.mrb[0].mxu0
  %v861 = vadd.f32 %v735, %v860
  %v862 = vpop.f32.mrb[0].mxu0
  %v863 = vpop.f32.mrb[0].mxu0
  %v864 = vadd.f32 %v735, %v863
  %v865 = vpop.f32.mrb[0].mxu0
  %866 = vmatprep.mubr.bf16.mxu0 0
  %867 = vmatmul.mubr.bf16.gmra.mrb[0].mxu0 %v772
  %v868 = vpop.f32.mrb[0].mxu0
  %v869 = vadd.f32 %v735, %v868
  %v870 = vpop.f32.mrb[0].mxu0
  %v871 = vpop.f32.mrb[0].mxu0
  %v872 = vadd.f32 %v735, %v871
  %v873 = vpop.f32.mrb[0].mxu0
  %874 = vmatprep.mubr.bf16.mxu0 0
  %875 = vmatmul.mubr.bf16.gmra.mrb[0].mxu0 %v775
  %v876 = vpop.f32.mrb[0].mxu0
  %v877 = vadd.f32 %v735, %v876
  %v878 = vpop.f32.mrb[0].mxu0
  %v879 = vpop.f32.mrb[0].mxu0
  %v880 = vadd.f32 %v735, %v879
  %v881 = vpop.f32.mrb[0].mxu0
  %882 = vmatprep.mubr.bf16.mxu0 0
  %883 = vmatmul.mubr.bf16.gmra.mrb[0].mxu0 %v778
  %v884 = vpop.f32.mrb[0].mxu0
  %v885 = vadd.f32 %v735, %v884
  %v886 = vpop.f32.mrb[0].mxu0
  %v887 = vpop.f32.mrb[0].mxu0
  %v888 = vadd.f32 %v735, %v887
  %v889 = vpop.f32.mrb[0].mxu0
  %890 = vmatprep.mubr.bf16.mxu0 0
  %891 = vmatmul.mubr.bf16.gmra.mrb[0].mxu0 %v781
  %v892 = vpop.f32.mrb[0].mxu0
  %v893 = vadd.f32 %v735, %v892
  %v894 = vpop.f32.mrb[0].mxu0
  %v895 = vpop.f32.mrb[0].mxu0
  %v896 = vadd.f32 %v735, %v895
  %v897 = vpop.f32.mrb[0].mxu0
  %898 = vmatprep.mubr.bf16.mxu0 0
  %899 = vmatmul.mubr.bf16.gmra.mrb[0].mxu0 %v784
  %v900 = vpop.f32.mrb[0].mxu0
  %v901 = vadd.f32 %v735, %v900
  %v902 = vpop.f32.mrb[0].mxu0
  %v903 = vpop.f32.mrb[0].mxu0
  %v904 = vadd.f32 %v735, %v903
  %v905 = vpop.f32.mrb[0].mxu0
  %906 = vmatprep.mubr.bf16.mxu0 0
  %907 = vmatmul.mubr.bf16.gmra.mrb[0].mxu0 %v787
  %v908 = vpop.f32.mrb[0].mxu0
  %v909 = vadd.f32 %v735, %v908
  %v910 = vpop.f32.mrb[0].mxu0
  %v911 = vpop.f32.mrb[0].mxu0
  %v912 = vadd.f32 %v735, %v911
  %v913 = vpop.f32.mrb[0].mxu0
  %914 = vmatprep.mubr.bf16.mxu0 0
  %915 = vmatmul.mubr.bf16.gmra.mrb[0].mxu0 %v790
  %v916 = vpop.f32.mrb[0].mxu0
  %v917 = vadd.f32 %v735, %v916
  %v918 = vpop.f32.mrb[0].mxu0
  %v919 = vpop.f32.mrb[0].mxu0
  %v920 = vadd.f32 %v735, %v919
  %v921 = vpop.f32.mrb[0].mxu0
  %922 = vmatprep.mubr.bf16.mxu0 0
  %923 = vmatmul.mubr.bf16.gmra.mrb[0].mxu0 %v793
  %v924 = vpop.f32.mrb[0].mxu0
  %v925 = vadd.f32 %v735, %v924
  %v926 = vpop.f32.mrb[0].mxu0
  %v927 = vpop.f32.mrb[0].mxu0
  %v928 = vadd.f32 %v735, %v927
  %v929 = vpop.f32.mrb[0].mxu0
  %930 = vmatprep.mubr.bf16.mxu0 0
  %931 = vmatmul.mubr.bf16.gmra.mrb[0].mxu0 %v796
  %v932 = vpop.f32.mrb[0].mxu0
  %v933 = vadd.f32 %v735, %v932
  %v934 = vpop.f32.mrb[0].mxu0
  %v935 = vpop.f32.mrb[0].mxu0
  %v936 = vadd.f32 %v735, %v935
  %v937 = vpop.f32.mrb[0].mxu0
  %938 = vmatprep.mubr.bf16.mxu0 0
  %939 = vmatmul.mubr.bf16.gmra.mrb[0].mxu0 %v799
  %v940 = vpop.f32.mrb[0].mxu0
  %v941 = vadd.f32 %v735, %v940
  %v942 = vpop.f32.mrb[0].mxu0
  %v943 = vpop.f32.mrb[0].mxu0
  %v944 = vadd.f32 %v735, %v943
  %v945 = vpop.f32.mrb[0].mxu0
  %946 = vmatprep.mubr.bf16.mxu0 0
  %947 = vmatmul.mubr.bf16.gmra.mrb[0].mxu0 %v802
  %v948 = vpop.f32.mrb[0].mxu0
  %v949 = vadd.f32 %v735, %v948
  %v950 = vpop.f32.mrb[0].mxu0
  %v951 = vpop.f32.mrb[0].mxu0
  %v952 = vadd.f32 %v735, %v951
  %v953 = vpop.f32.mrb[0].mxu0
  %954 = vmatprep.mubr.bf16.mxu0 0
  %955 = vmatmul.mubr.bf16.gmra.mrb[0].mxu0 %v805
  %v956 = vpop.f32.mrb[0].mxu0
  %v957 = vadd.f32 %v735, %v956
  %v958 = vpop.f32.mrb[0].mxu0
  %v959 = vpop.f32.mrb[0].mxu0
  %v960 = vadd.f32 %v735, %v959
  %v961 = vpop.f32.mrb[0].mxu0
  %962 = vmatprep.mubr.bf16.mxu0 0
  %963 = vmatmul.mubr.bf16.gmra.mrb[0].mxu0 %v808
  %v964 = vpop.f32.mrb[0].mxu0
  %v965 = vadd.f32 %v735, %v964
  %v966 = vpop.f32.mrb[0].mxu0
  %v967 = vpop.f32.mrb[0].mxu0
  %v968 = vadd.f32 %v735, %v967
  %v969 = vpop.f32.mrb[0].mxu0
  %970 = vdwg.mxu0
  %vm971 = vcmask 80896
  %972 = vst.msk [vmem:[%s7] sm:$0xff] %vm971, %v845
  %973 = vst.msk [vmem:[%s7 + $0x8] sm:$0xff] %vm971, %v848
  %974 = vst.msk [vmem:[%s7 + $0x10] sm:$0xff] %vm971, %v853
  %975 = vst.msk [vmem:[%s7 + $0x18] sm:$0xff] %vm971, %v856
  %976 = vst.msk [vmem:[%s7 + $0x20] sm:$0xff] %vm971, %v861
  %977 = vst.msk [vmem:[%s7 + $0x28] sm:$0xff] %vm971, %v864
  %978 = vst.msk [vmem:[%s7 + $0x30] sm:$0xff] %vm971, %v869
  %979 = vst.msk [vmem:[%s7 + $0x38] sm:$0xff] %vm971, %v872
  %980 = vst.msk [vmem:[%s7 + $0x40] sm:$0xff] %vm971, %v877
  %981 = vst.msk [vmem:[%s7 + $0x48] sm:$0xff] %vm971, %v880
  %982 = vst.msk [vmem:[%s7 + $0x50] sm:$0xff] %vm971, %v885
  %983 = vst.msk [vmem:[%s7 + $0x58] sm:$0xff] %vm971, %v888
  %984 = vst.msk [vmem:[%s7 + $0x60] sm:$0xff] %vm971, %v893
  %985 = vst.msk [vmem:[%s7 + $0x68] sm:$0xff] %vm971, %v896
  %986 = vst.msk [vmem:[%s7 + $0x70] sm:$0xff] %vm971, %v901
  %987 = vst.msk [vmem:[%s7 + $0x78] sm:$0xff] %vm971, %v904
  %988 = vst.msk [vmem:[%s7 + $0x80] sm:$0xff] %vm971, %v909
  %989 = vst.msk [vmem:[%s7 + $0x88] sm:$0xff] %vm971, %v912
  %990 = vst.msk [vmem:[%s7 + $0x90] sm:$0xff] %vm971, %v917
  %991 = vst.msk [vmem:[%s7 + $0x98] sm:$0xff] %vm971, %v920
  %992 = vst.msk [vmem:[%s7 + $0xa0] sm:$0xff] %vm971, %v925
  %993 = vst.msk [vmem:[%s7 + $0xa8] sm:$0xff] %vm971, %v928
  %994 = vst.msk [vmem:[%s7 + $0xb0] sm:$0xff] %vm971, %v933
  %995 = vst.msk [vmem:[%s7 + $0xb8] sm:$0xff] %vm971, %v936
  %996 = vst.msk [vmem:[%s7 + $0xc0] sm:$0xff] %vm971, %v941
  %997 = vst.msk [vmem:[%s7 + $0xc8] sm:$0xff] %vm971, %v944
  %998 = vst.msk [vmem:[%s7 + $0xd0] sm:$0xff] %vm971, %v949
  %999 = vst.msk [vmem:[%s7 + $0xd8] sm:$0xff] %vm971, %v952
  %1000 = vst.msk [vmem:[%s7 + $0xe0] sm:$0xff] %vm971, %v957
  %1001 = vst.msk [vmem:[%s7 + $0xe8] sm:$0xff] %vm971, %v960
  %1002 = vst.msk [vmem:[%s7 + $0xf0] sm:$0xff] %vm971, %v965
  %1003 = vst.msk [vmem:[%s7 + $0xf8] sm:$0xff] %vm971, %v968
  // Predicated region
  $region30: #{tpu_custom_call.1} parent=0 // pred_check
    _
  $region31: #{tpu_custom_call.1} parent=0 // pred_check_branch
    %1005 = sbr.rel (0) target = $region33
  $region32: #{tpu_custom_call.1} parent=0 // pred_region
    _
  $region33: #{tpu_custom_call.1} parent=0 // pred_fallthru
    _
  // Predicated region
  $region34: #{tpu_custom_call.1} parent=0 // pred_check
    _
  $region35: #{tpu_custom_call.1} parent=0 // pred_check_branch
    %1007 = sbr.rel (0) target = $region37
  $region36: #{tpu_custom_call.1} parent=0 // pred_region
    _
  $region37: #{tpu_custom_call.1} parent=0 // pred_fallthru
    _

</llo_original>
